<compile_context>
chip_gen: v7x
topology: tpu7x:2x2x1
jax: 0.10.0
libtpu: 0.0.40
codegen_flags: <defaults>
</compile_context>

<pallas_src>
import numpy as np
import jax
import jax.numpy as jnp
from jax import lax
from jax.experimental import pallas as pl
from jax.experimental.pallas import tpu as pltpu


def make_kernel(k):
    """FIR kernel construction (numpy, matches the torch version)."""
    k = np.asarray(k, dtype=np.float32)
    if k.ndim == 1:
        k = k[None, :] * k[:, None]
    k = k / k.sum()
    return k


def _upfirdn1d_matrix(k1d, up, pad0, pad1, n_in):
    """Banded matrix U (n_out x n_in) with  U @ x == upfirdn1d(x, k1d, up, down=1, pad)."""
    k1d = np.asarray(k1d, np.float32)
    kflip = k1d[::-1]
    kt = k1d.shape[0]
    n_out = n_in * up + pad0 + pad1 - kt + 1
    assert n_out > 0
    U = np.zeros((n_out, n_in), np.float32)
    for o in range(n_out):
        for i in range(n_in):
            j = pad0 + i * up - o
            if 0 <= j < kt:
                U[o, i] = kflip[j]
    return U


def _pick_block_nc(nc, h, w, hout, wout, itemsize, budget_bytes=8 << 20, max_unroll=32):
    """Largest divisor of nc that (a) keeps double-buffered in+out blocks under the
    VMEM budget (safe across v5e/v6e/v7x), (b) keeps >= 2 grid blocks when possible
    (megacore sharding), (c) caps the in-kernel static unroll."""
    per_slab = 2 * itemsize * (h * w + hout * wout)      # double-buffered in + out
    cap = max(1, budget_bytes // max(per_slab, 1))
    cap = min(cap, max_unroll)
    if nc >= 2:
        cap = max(1, min(cap, nc // 2))
    cap = min(cap, nc)
    for b in range(int(cap), 0, -1):
        if nc % b == 0:
            return b
    return 1


def _make_blur_kernel(bnc):
    """Kernel body: per slab, Y = Uh @ (X @ Uw^T) -- two small MXU matmuls,
    no transposes, no cross-lane shifted slices, no zero-inserted data."""
    def kernel(uh_ref, uwt_ref, x_ref, o_ref):
        uh = uh_ref[...]      # (Hout, H)  f32, resident across the grid
        uwt = uwt_ref[...]    # (W, Wout)  f32, resident across the grid
        for b in range(bnc):  # static unroll (bnc capped at 32)
            xb = x_ref[b].astype(jnp.float32)                          # (H, W)
            t = jnp.dot(xb, uwt, preferred_element_type=jnp.float32)   # (H, Wout)
            y = jnp.dot(uh, t, preferred_element_type=jnp.float32)     # (Hout, Wout)
            o_ref[b] = y.astype(o_ref.dtype)
    return kernel


def blur_upsample_pallas(x, k1h, k1w, factor, pad):
    """x: (N, C, H, W). Returns (N, C, H*factor, W*factor); dtype preserved."""
    N, C, H, W = x.shape
    up = factor
    pad0, pad1 = pad
    kh, kw = len(k1h), len(k1w)
    Hout = H * up + pad0 + pad1 - kh + 1
    Wout = W * up + pad0 + pad1 - kw + 1

    Uh = _upfirdn1d_matrix(k1h, up, pad0, pad1, H)                              # (Hout, H)
    UwT = np.ascontiguousarray(_upfirdn1d_matrix(k1w, up, pad0, pad1, W).T)     # (W, Wout)

    NC = N * C
    xf = x.reshape(NC, H, W)                       # free reshape, no transpose, no copy
    itemsize = jnp.dtype(x.dtype).itemsize
    bnc = _pick_block_nc(NC, H, W, Hout, Wout, itemsize)
    grid = (NC // bnc,)

    # VMEM: double-buffered (in + out) blocks + the two broadcast matrices + slack.
    vmem_needed = (2 * itemsize * bnc * (H * W + Hout * Wout)
                   + 2 * 4 * (Hout * H + W * Wout))
    vmem_limit = int(min(max(2 * vmem_needed + (4 << 20), 16 << 20), 48 << 20))

    flops = 2 * NC * H * Wout * (W + Hout)
    bytes_accessed = ((NC * H * W + NC * Hout * Wout) * itemsize
                      + (Uh.size + UwT.size) * 4)

    out = pl.pallas_call(
        _make_blur_kernel(bnc),
        out_shape=jax.ShapeDtypeStruct((NC, Hout, Wout), x.dtype),
        grid=grid,
        in_specs=[
            pl.BlockSpec((Hout, H), lambda n: (0, 0)),       # Uh  (broadcast, resident)
            pl.BlockSpec((W, Wout), lambda n: (0, 0)),       # Uw^T (broadcast, resident)
            pl.BlockSpec((bnc, H, W), lambda n: (n, 0, 0)),  # bnc slabs of x per step
        ],
        out_specs=pl.BlockSpec((bnc, Hout, Wout), lambda n: (n, 0, 0)),
        compiler_params=pltpu.CompilerParams(
            dimension_semantics=("parallel",),
            vmem_limit_bytes=vmem_limit),
        cost_estimate=pl.CostEstimate(flops=flops, transcendentals=0,
                                      bytes_accessed=bytes_accessed),
    )(jnp.asarray(Uh), jnp.asarray(UwT), xf)

    # TODO(synk): for very small feature maps (W*factor < 128) the store lane width is
    # below a full vreg; folding channels into the lane dim would require NCHW<->blocked
    # transposes in HBM that cost more than they save at this NCHW boundary.
    return out.reshape(N, C, Hout, Wout)


class BlurUpsample:
    """JAX/Pallas port of models.layers.BlurUpsample."""

    def __init__(self, kernel, factor=2):
        self.factor = factor
        k = np.asarray(kernel, dtype=np.float32)
        k2 = make_kernel(k) * (factor ** 2)
        self.kernel = k2                              # 2D buffer (kept for parity / reference)
        p = k2.shape[0] - factor
        pad0 = (p + 1) // 2 + factor - 1
        pad1 = p // 2
        self.pad = (pad0, pad1)
        if k.ndim == 1:
            k1 = (k / k.sum()) * factor               # exact separable 1D factor of k2
            self.k1h, self.k1w = k1, k1
        else:
            # Rank-1 (separable) factorization of a user-supplied 2D FIR kernel.
            # TODO(synk): genuinely non-separable 2D kernels are not supported by the
            # separable-matmul path; StyleGAN blur kernels are always separable.
            u, s, vt = np.linalg.svd(k2)
            self.k1h = u[:, 0] * np.sqrt(s[0])
            self.k1w = vt[0, :] * np.sqrt(s[0])

    def __call__(self, x):
        return blur_upsample_pallas(x, self.k1h, self.k1w, self.factor, self.pad)


def _reference(x, fir_kernel, factor, pad):
    """Pure-JAX reference via lax.conv_general_dilated (for validation)."""
    N, C, H, W = x.shape
    pad0, pad1 = pad
    up = factor
    w_flip = jnp.asarray(np.flip(np.asarray(fir_kernel), (0, 1)).copy(), jnp.float32)
    lhs = x.reshape(N * C, 1, H, W).astype(jnp.float32)
    # lhs_dilation drops the trailing inserted zeros; compensate with extra trailing pad.
    out = lax.conv_general_dilated(
        lhs, w_flip[None, None],
        window_strides=(1, 1),
        padding=((pad0, pad1 + up - 1), (pad0, pad1 + up - 1)),
        lhs_dilation=(up, up),
        dimension_numbers=("NCHW", "OIHW", "NCHW"))
    return out.reshape(N, C, H * up, W * up)


if __name__ == "__main__":
    key = jax.random.PRNGKey(0)
    x = jax.random.normal(key, (2, 4, 16, 16), dtype=jnp.float32)

    blur = BlurUpsample([1, 3, 3, 1], factor=2)
    out = jax.block_until_ready(blur(x))
    assert out.shape == (2, 4, 32, 32), out.shape

    ref = jax.block_until_ready(_reference(x, blur.kernel, blur.factor, blur.pad))
    np.testing.assert_allclose(np.asarray(out), np.asarray(ref), rtol=1e-4, atol=1e-3)

    print("KERNEL_OK")
</pallas_src>

<mosaic_0001>
module attributes {stable_mosaic.version = 11 : i64} {
  func.func @kernel(%arg0: i32, %arg1: memref<32x16xf32, #tpu.memory_space<vmem>>, %arg2: memref<16x32xf32, #tpu.memory_space<vmem>>, %arg3: memref<4x16x16xf32, #tpu.memory_space<vmem>>, %arg4: memref<4x32x32xf32, #tpu.memory_space<vmem>>) attributes {dimension_semantics = [#tpu.dimension_semantics<parallel>], iteration_bounds = array<i64: 2>, scalar_prefetch = 0 : i64, scratch_operands = 0 : i64, tpu.core_type = #tpu.core_type<tc>, window_params = [{pipeline_mode = #tpu.pipeline_mode<synchronous>, transform_indices = @transform_0, window_bounds = array<i64: 32, 16>}, {pipeline_mode = #tpu.pipeline_mode<synchronous>, transform_indices = @transform_1, window_bounds = array<i64: 16, 32>}, {transform_indices = @transform_2, window_bounds = array<i64: 4, 16, 16>}, {transform_indices = @transform_3, window_bounds = array<i64: 4, 32, 32>}]} {
    %c0 = arith.constant 0 : index
    %c0_0 = arith.constant 0 : index
    %0 = vector.load %arg1[%c0, %c0_0] : memref<32x16xf32, #tpu.memory_space<vmem>>, vector<32x16xf32>
    %c0_1 = arith.constant 0 : index
    %c0_2 = arith.constant 0 : index
    %1 = vector.load %arg2[%c0_1, %c0_2] : memref<16x32xf32, #tpu.memory_space<vmem>>, vector<16x32xf32>
    %c0_3 = arith.constant 0 : index
    %c0_4 = arith.constant 0 : index
    %c0_5 = arith.constant 0 : index
    %2 = vector.load %arg3[%c0_3, %c0_4, %c0_5] : memref<4x16x16xf32, #tpu.memory_space<vmem>>, vector<1x16x16xf32>
    %3 = vector.shape_cast %2 : vector<1x16x16xf32> to vector<16x16xf32>
    %cst = arith.constant dense<0.000000e+00> : vector<16x32xf32>
    %4 = tpu.matmul %3, %1, %cst {dimension_numbers = #tpu.dot_dimension_numbers<[1], [0], [0], [1], [0, 0, 1, 1], [], []>} : vector<16x16xf32>, vector<16x32xf32>, vector<16x32xf32> -> vector<16x32xf32>
    %cst_6 = arith.constant dense<0.000000e+00> : vector<32x32xf32>
    %5 = tpu.matmul %0, %4, %cst_6 {dimension_numbers = #tpu.dot_dimension_numbers<[1], [0], [0], [1], [0, 0, 1, 1], [], []>} : vector<32x16xf32>, vector<16x32xf32>, vector<32x32xf32> -> vector<32x32xf32>
    %c0_7 = arith.constant 0 : index
    %c0_8 = arith.constant 0 : index
    %c0_9 = arith.constant 0 : index
    %6 = vector.load %arg4[%c0_7, %c0_8, %c0_9] : memref<4x32x32xf32, #tpu.memory_space<vmem>>, vector<1x32x32xf32>
    %7 = vector.shape_cast %6 : vector<1x32x32xf32> to vector<32x32xf32>
    %8 = vector.shape_cast %5 : vector<32x32xf32> to vector<1x32x32xf32>
    tpu.vector_store %arg4[%c0_7, %c0_8, %c0_9], %8 {strides = array<i32>} : memref<4x32x32xf32, #tpu.memory_space<vmem>>, vector<1x32x32xf32>,
    %c1 = arith.constant 1 : index
    %c0_10 = arith.constant 0 : index
    %c0_11 = arith.constant 0 : index
    %9 = vector.load %arg3[%c1, %c0_10, %c0_11] : memref<4x16x16xf32, #tpu.memory_space<vmem>>, vector<1x16x16xf32>
    %10 = vector.shape_cast %9 : vector<1x16x16xf32> to vector<16x16xf32>
    %cst_12 = arith.constant dense<0.000000e+00> : vector<16x32xf32>
    %11 = tpu.matmul %10, %1, %cst_12 {dimension_numbers = #tpu.dot_dimension_numbers<[1], [0], [0], [1], [0, 0, 1, 1], [], []>} : vector<16x16xf32>, vector<16x32xf32>, vector<16x32xf32> -> vector<16x32xf32>
    %cst_13 = arith.constant dense<0.000000e+00> : vector<32x32xf32>
    %12 = tpu.matmul %0, %11, %cst_13 {dimension_numbers = #tpu.dot_dimension_numbers<[1], [0], [0], [1], [0, 0, 1, 1], [], []>} : vector<32x16xf32>, vector<16x32xf32>, vector<32x32xf32> -> vector<32x32xf32>
    %c1_14 = arith.constant 1 : index
    %c0_15 = arith.constant 0 : index
    %c0_16 = arith.constant 0 : index
    %13 = vector.load %arg4[%c1_14, %c0_15, %c0_16] : memref<4x32x32xf32, #tpu.memory_space<vmem>>, vector<1x32x32xf32>
    %14 = vector.shape_cast %13 : vector<1x32x32xf32> to vector<32x32xf32>
    %15 = vector.shape_cast %12 : vector<32x32xf32> to vector<1x32x32xf32>
    tpu.vector_store %arg4[%c1_14, %c0_15, %c0_16], %15 {strides = array<i32>} : memref<4x32x32xf32, #tpu.memory_space<vmem>>, vector<1x32x32xf32>,
    %c2 = arith.constant 2 : index
    %c0_17 = arith.constant 0 : index
    %c0_18 = arith.constant 0 : index
    %16 = vector.load %arg3[%c2, %c0_17, %c0_18] : memref<4x16x16xf32, #tpu.memory_space<vmem>>, vector<1x16x16xf32>
    %17 = vector.shape_cast %16 : vector<1x16x16xf32> to vector<16x16xf32>
    %cst_19 = arith.constant dense<0.000000e+00> : vector<16x32xf32>
    %18 = tpu.matmul %17, %1, %cst_19 {dimension_numbers = #tpu.dot_dimension_numbers<[1], [0], [0], [1], [0, 0, 1, 1], [], []>} : vector<16x16xf32>, vector<16x32xf32>, vector<16x32xf32> -> vector<16x32xf32>
    %cst_20 = arith.constant dense<0.000000e+00> : vector<32x32xf32>
    %19 = tpu.matmul %0, %18, %cst_20 {dimension_numbers = #tpu.dot_dimension_numbers<[1], [0], [0], [1], [0, 0, 1, 1], [], []>} : vector<32x16xf32>, vector<16x32xf32>, vector<32x32xf32> -> vector<32x32xf32>
    %c2_21 = arith.constant 2 : index
    %c0_22 = arith.constant 0 : index
    %c0_23 = arith.constant 0 : index
    %20 = vector.load %arg4[%c2_21, %c0_22, %c0_23] : memref<4x32x32xf32, #tpu.memory_space<vmem>>, vector<1x32x32xf32>
    %21 = vector.shape_cast %20 : vector<1x32x32xf32> to vector<32x32xf32>
    %22 = vector.shape_cast %19 : vector<32x32xf32> to vector<1x32x32xf32>
    tpu.vector_store %arg4[%c2_21, %c0_22, %c0_23], %22 {strides = array<i32>} : memref<4x32x32xf32, #tpu.memory_space<vmem>>, vector<1x32x32xf32>,
    %c3 = arith.constant 3 : index
    %c0_24 = arith.constant 0 : index
    %c0_25 = arith.constant 0 : index
    %23 = vector.load %arg3[%c3, %c0_24, %c0_25] : memref<4x16x16xf32, #tpu.memory_space<vmem>>, vector<1x16x16xf32>
    %24 = vector.shape_cast %23 : vector<1x16x16xf32> to vector<16x16xf32>
    %cst_26 = arith.constant dense<0.000000e+00> : vector<16x32xf32>
    %25 = tpu.matmul %24, %1, %cst_26 {dimension_numbers = #tpu.dot_dimension_numbers<[1], [0], [0], [1], [0, 0, 1, 1], [], []>} : vector<16x16xf32>, vector<16x32xf32>, vector<16x32xf32> -> vector<16x32xf32>
    %cst_27 = arith.constant dense<0.000000e+00> : vector<32x32xf32>
    %26 = tpu.matmul %0, %25, %cst_27 {dimension_numbers = #tpu.dot_dimension_numbers<[1], [0], [0], [1], [0, 0, 1, 1], [], []>} : vector<32x16xf32>, vector<16x32xf32>, vector<32x32xf32> -> vector<32x32xf32>
    %c3_28 = arith.constant 3 : index
    %c0_29 = arith.constant 0 : index
    %c0_30 = arith.constant 0 : index
    %27 = vector.load %arg4[%c3_28, %c0_29, %c0_30] : memref<4x32x32xf32, #tpu.memory_space<vmem>>, vector<1x32x32xf32>
    %28 = vector.shape_cast %27 : vector<1x32x32xf32> to vector<32x32xf32>
    %29 = vector.shape_cast %26 : vector<32x32xf32> to vector<1x32x32xf32>
    tpu.vector_store %arg4[%c3_28, %c0_29, %c0_30], %29 {strides = array<i32>} : memref<4x32x32xf32, #tpu.memory_space<vmem>>, vector<1x32x32xf32>,
    return
  }
  func.func @transform_0(%arg0: i32) -> (i32, i32) {
    %c0_i32 = arith.constant 0 : i32
    %c0_i32_0 = arith.constant 0 : i32
    %c0_i32_1 = arith.constant 0 : i32
    return %c0_i32, %c0_i32_0 : i32, i32
  }
  func.func @transform_1(%arg0: i32) -> (i32, i32) {
    %c0_i32 = arith.constant 0 : i32
    %c0_i32_0 = arith.constant 0 : i32
    %c0_i32_1 = arith.constant 0 : i32
    return %c0_i32, %c0_i32_0 : i32, i32
  }
  func.func @transform_2(%arg0: i32) -> (i32, i32, i32) {
    %c0_i32 = arith.constant 0 : i32
    %c0_i32_0 = arith.constant 0 : i32
    %c0_i32_1 = arith.constant 0 : i32
    return %arg0, %c0_i32, %c0_i32_0 : i32, i32, i32
  }
  func.func @transform_3(%arg0: i32) -> (i32, i32, i32) {
    %c0_i32 = arith.constant 0 : i32
    %c0_i32_0 = arith.constant 0 : i32
    %c0_i32_1 = arith.constant 0 : i32
    return %arg0, %c0_i32, %c0_i32_0 : i32, i32, i32
  }
}

</mosaic_0001>

<llo_original>
// kernel: tpu_custom_call.1
$region0: #{tpu_custom_call.1}
  #allocation0 [shape = 'u32[]', space=smem, size = 0x4, offset = 0x4, fixed_abs, tag = 'smem constant byte address 0x4 - core index']
  #allocation1 [shape = 'u32[144,128]{1,0:T(1,128)}', space=vmem, size = 0x12000, scoped, tag = 'internal scratch']
  %s0 = inlined_call_operand.vmem [shape: f32[32,16], index: 0, kind: input, shape index: {}]
  %s1 = inlined_call_operand.vmem [shape: f32[16,32], index: 1, kind: input, shape index: {}]
  %s2 = inlined_call_operand.hbm [shape: f32[8,16,16], index: 2, kind: input, shape index: {}]
  %s3 = inlined_call_operand.hbm [shape: f32[8,32,32], index: 3, kind: output, shape index: {}]
  %s4 = sld [smem:[#allocation0]]
  $region49: #{tpu_custom_call.1} parent=0
    _
  %s6 = ssub.s32 1, %s4
  %s7 = scalar_select 0, %s6, %s4
  $region1: #{tpu_custom_call.1} parent=0
    #allocation2 [shape = 'u8[65536]{0}', space=vmem, size = 0x10000, scoped, tag = 'input window, operand 2']
    #allocation3 [shape = 's32[2]{0}', space=sflag, size = 0x8, scoped, tag = 'scoped memory for tpu_custom_call.1']
    #allocation4 [shape = 's32[2]{0}', space=sflag, size = 0x8, scoped, tag = 'scoped memory for tpu_custom_call.1']
    #allocation5 [shape = 'u8[131072]{0}', space=vmem, size = 0x20000, scoped, tag = 'output window, operand 0']
    %8 = vsyncpa [#allocation3], 0
    %s9 = scalar_lea.sflag [#allocation3], 1
    %10 = vsyncpa %s9, 0
    %11 = vsyncpa [#allocation4], 0
    %s12 = scalar_lea.sflag [#allocation4], 1
    %13 = vsyncpa %s12, 0
    loop: start=0, step=1, limit=4
    $region2: #{tpu_custom_call.1} parent=1 // loop_pre_header
      _
    $region3: #{tpu_custom_call.1} parent=1 // loop_header
      %s15 = sphi 0, %s19
      %p16 = scmp.ge.s32.totalorder %s15, 4
      %s23 = sphi 0, %s23
      %s25 = sphi 0, %s23
      %s26 = sphi 0, %s25
      %s40 = sphi 0, %s26
      %s44 = sphi 0, %s44
      %s46 = sphi 0, %s44
      %s47 = sphi 0, %s46
      %s61 = sphi 0, %s47
      %s67 = sphi 0, %s69
      %s70 = sphi 0, %s67
      %s71 = sphi 0, %s70
      %s87 = sphi 0, %s71
      %s93 = sphi 0, %s95
      %s96 = sphi 0, %s93
      %s97 = sphi 0, %s96
      %s113 = sphi 0, %s97
    $region4: #{tpu_custom_call.1} parent=1 // loop_header_branch
      %18 = sbr.rel (%p16) target = $region8
    $region5: #{tpu_custom_call.1} parent=1 // loop_body
      %s20 = ssub.s32 %s15, 1
      %s21 = ssub.s32 %s15, 2
      %s22 = sadd.s32 %s15, 1
      %s24 = sadd.s32 %s23, 1
      %p27 = scmp.eq.s32.totalorder %s15, 1
      %p28 = scmp.ne.s32.totalorder %s23, %s25
      %p29 = scmp.eq.s32.totalorder %s15, 0
      %p30 = por %p28, %p29
      %p31 = scmp.ne.s32.totalorder %s23, %s25
      %p32 = scmp.eq.s32.totalorder %s20, 1
      %p33 = por %p31, %p32
      %p34 = scmp.ne.s32.totalorder %s25, %s26
      %p35 = scmp.eq.s32.totalorder %s20, 0
      %p36 = por %p34, %p35
      %p37 = scmp.ne.s32.totalorder %s25, %s26
      %p38 = scmp.eq.s32.totalorder %s21, 1
      %p39 = por %p37, %p38
      %p41 = scmp.ne.s32.totalorder %s26, %s40
      %p42 = scmp.eq.s32.totalorder %s21, 0
      %p43 = por %p41, %p42
      %s45 = sadd.s32 %s44, 1
      %p48 = scmp.eq.s32.totalorder %s15, 1
      %p49 = scmp.ne.s32.totalorder %s44, %s46
      %p50 = scmp.eq.s32.totalorder %s15, 0
      %p51 = por %p49, %p50
      %p52 = scmp.ne.s32.totalorder %s44, %s46
      %p53 = scmp.eq.s32.totalorder %s20, 1
      %p54 = por %p52, %p53
      %p55 = scmp.ne.s32.totalorder %s46, %s47
      %p56 = scmp.eq.s32.totalorder %s20, 0
      %p57 = por %p55, %p56
      %p58 = scmp.ne.s32.totalorder %s46, %s47
      %p59 = scmp.eq.s32.totalorder %s21, 1
      %p60 = por %p58, %p59
      %p62 = scmp.ne.s32.totalorder %s47, %s61
      %p63 = scmp.eq.s32.totalorder %s21, 0
      %p64 = por %p62, %p63
      %s65 = ssub.s32 %s15, %s22
      %p66 = scmp.eq.s32.totalorder %s65, 0
      %s68 = sadd.s32 %s67, 1
      %s69 = scalar_select %p66, %s67, %s68
      %p72 = pneg %p66
      %p73 = scmp.eq.s32.totalorder %s15, 1
      %p74 = por %p72, %p73
      %p75 = scmp.ne.s32.totalorder %s67, %s70
      %p76 = scmp.eq.s32.totalorder %s15, 0
      %p77 = por %p75, %p76
      %p78 = scmp.ne.s32.totalorder %s67, %s70
      %p79 = scmp.eq.s32.totalorder %s20, 1
      %p80 = por %p78, %p79
      %p81 = scmp.ne.s32.totalorder %s70, %s71
      %p82 = scmp.eq.s32.totalorder %s20, 0
      %p83 = por %p81, %p82
      %p84 = scmp.ne.s32.totalorder %s70, %s71
      %p85 = scmp.eq.s32.totalorder %s21, 1
      %p86 = por %p84, %p85
      %p88 = scmp.ne.s32.totalorder %s71, %s87
      %p89 = scmp.eq.s32.totalorder %s21, 0
      %p90 = por %p88, %p89
      %s91 = ssub.s32 %s15, %s22
      %p92 = scmp.eq.s32.totalorder %s91, 0
      %s94 = sadd.s32 %s93, 1
      %s95 = scalar_select %p92, %s93, %s94
      %p98 = pneg %p92
      %p99 = scmp.eq.s32.totalorder %s15, 1
      %p100 = por %p98, %p99
      %p101 = scmp.ne.s32.totalorder %s93, %s96
      %p102 = scmp.eq.s32.totalorder %s15, 0
      %p103 = por %p101, %p102
      %p104 = scmp.ne.s32.totalorder %s93, %s96
      %p105 = scmp.eq.s32.totalorder %s20, 1
      %p106 = por %p104, %p105
      %p107 = scmp.ne.s32.totalorder %s96, %s97
      %p108 = scmp.eq.s32.totalorder %s20, 0
      %p109 = por %p107, %p108
      %p110 = scmp.ne.s32.totalorder %s96, %s97
      %p111 = scmp.eq.s32.totalorder %s21, 1
      %p112 = por %p110, %p111
      %p114 = scmp.ne.s32.totalorder %s97, %s113
      %p115 = scmp.eq.s32.totalorder %s21, 0
      %p116 = por %p114, %p115
      %p117 = scmp.le.s32.totalorder 1, %s15
      %p118 = scmp.lt.s32.totalorder %s15, 3
      %p119 = pnand %p117, %p118
      %p120 = pneg %p119
      // Predicated region
      $region9: #{tpu_custom_call.1} parent=5 // pred_check
        _
      $region10: #{tpu_custom_call.1} parent=5 // pred_check_branch
        %122 = sbr.rel (%p119) target = $region12
      $region11: #{tpu_custom_call.1} parent=5 // pred_region
        %s123 = ssub.s32 %s15, 1
        // Predicated region
        $region13: #{tpu_custom_call.1} parent=11 // pred_check
          %p124 = pneg %p36
        $region14: #{tpu_custom_call.1} parent=11 // pred_check_branch
          %126 = sbr.rel (%p124) target = $region16
        $region15: #{tpu_custom_call.1} parent=11 // pred_region
          _
        $region16: #{tpu_custom_call.1} parent=11 // pred_fallthru
          _
        // Predicated region
        $region17: #{tpu_custom_call.1} parent=11 // pred_check
          %p127 = pneg %p57
        $region18: #{tpu_custom_call.1} parent=11 // pred_check_branch
          %129 = sbr.rel (%p127) target = $region20
        $region19: #{tpu_custom_call.1} parent=11 // pred_region
          _
        $region20: #{tpu_custom_call.1} parent=11 // pred_fallthru
          _
      $region12: #{tpu_custom_call.1} parent=5 // pred_fallthru
        _
      %p130 = scmp.lt.s32.totalorder %s15, 2
      // Predicated region
      $region21: #{tpu_custom_call.1} parent=5 // pred_check
        %p131 = pneg %p130
      $region22: #{tpu_custom_call.1} parent=5 // pred_check_branch
        %133 = sbr.rel (%p131) target = $region24
      $region23: #{tpu_custom_call.1} parent=5 // pred_region
        // Predicated region
        $region25: #{tpu_custom_call.1} parent=23 // pred_check
          %p134 = pneg %p77
        $region26: #{tpu_custom_call.1} parent=23 // pred_check_branch
          %136 = sbr.rel (%p134) target = $region28
        $region27: #{tpu_custom_call.1} parent=23 // pred_region
          %s137 = sand.u32 %s67, 1
          %s138 = scalar_lea.sflag [#allocation3], %s137
          %s139 = sand.u32 %s67, 1
          %s140 = smul.addr %s139, 64
          %s141 = scalar_lea.vmem [#allocation2], %s140
          %s142 = smul.u32 4, %s15
          %s144 = ssub.s32 1024, 1024
          %145 = vsyncadd %s138, %s144
          %s146 = smul.addr %s142, 2
          %s147 = smul.addr %s146, 128
          %s148 = scalar_lea.hbm %s2, %s147
          %s149 = sshll.u32 %s141, 4
          %s150 = int_to_ptr.vmem [resolvable:$true] %s149
          %155 = dma.hbm_to_vmem [thread:$0]  %s148, 1024, %s150, %s138, 128, 128, 8
        $region28: #{tpu_custom_call.1} parent=23 // pred_fallthru
          _
      $region24: #{tpu_custom_call.1} parent=5 // pred_fallthru
        _
      %p156 = scmp.le.s32.totalorder 1, %s15
      %p157 = scmp.lt.s32.totalorder %s15, 3
      %p158 = pnand %p156, %p157
      %p159 = pneg %p158
      // Predicated region
      $region29: #{tpu_custom_call.1} parent=5 // pred_check
        _
      $region30: #{tpu_custom_call.1} parent=5 // pred_check_branch
        %161 = sbr.rel (%p158) target = $region32
      $region31: #{tpu_custom_call.1} parent=5 // pred_region
        %s162 = ssub.s32 %s15, 1
        %s163 = sand.u32 %s70, 1
        %s164 = scalar_lea.sflag [#allocation3], %s163
        %s165 = sand.u32 %s70, 1
        %s166 = smul.addr %s165, 64
        %s167 = scalar_lea.vmem [#allocation2], %s166
        // Predicated region
        $region33: #{tpu_custom_call.1} parent=31 // pred_check
          %p168 = pneg %p83
        $region34: #{tpu_custom_call.1} parent=31 // pred_check_branch
          %170 = sbr.rel (%p168) target = $region36
        $region35: #{tpu_custom_call.1} parent=31 // pred_region
          %171 = dma.done %s164, 1024
        $region36: #{tpu_custom_call.1} parent=31 // pred_fallthru
          _
        %p172 = pneg %p36
        %p173 = pneg %p33
        %p174 = pneg %p57
        %p175 = pneg %p54
        %s176 = sand.u32 %s70, 1
        %s177 = scalar_lea.sflag [#allocation3], %s176
        %s178 = sand.u32 %s70, 1
        %s179 = smul.addr %s178, 64
        %s180 = scalar_lea.vmem [#allocation2], %s179
        %p181 = pneg %p83
        %p182 = pneg %p80
        %p183 = pneg %p109
        %p184 = pneg %p106
        %s185 = sand.u32 %s96, 1
        %s186 = scalar_lea.sflag [#allocation4], %s185
        %s187 = sand.u32 %s96, 1
        %s188 = smul.addr %s187, 128
        %s189 = scalar_lea.vmem [#allocation5], %s188
        %s190 = smul.u32 4, %s20
        %s191 = smul.u32 4, %s20
        %v192 = vld [vmem:[%s0] sm:$0xff]
        %v193 = vld [vmem:[%s0 + $0x8] sm:$0xff]
        %v194 = vld [vmem:[%s0 + $0x10] sm:$0xff]
        %v195 = vld [vmem:[%s0 + $0x18] sm:$0xff]
        %v196 = vld [vmem:[%s1] sm:$0xff]
        %v197 = vld [vmem:[%s1 + $0x8] sm:$0xff]
        %v198 = vld [vmem:[%s167] sm:$0xff]
        %v199 = vld [vmem:[%s167 + $0x8] sm:$0xff]
        %vm200 = vcmask 130048
        %v202 = vsel %vm200, %v198, 0
        %v205 = vsel %vm200, %v199, 0
        %207 = vmatprep.subr.mxu0 0.0
        %208 = vmatpush1.msra.mxu0 %v196
        %209 = vmatprep.subr.mxu0 0.0
        %210 = vmatpush1.msra.mxu0 %v197
        %211 = vmatprep.subr.mxu0 0.0
        %212 = vmatpush1.msra.mxu0 0.0
        %213 = vmatprep.subr.mxu0 0.0
        %214 = vmatpush1.msra.mxu0 0.0
        %215 = vmatprep.subr.mxu0 0.0
        %216 = vmatpush1.msra.mxu0 0.0
        %217 = vmatprep.subr.mxu0 0.0
        %218 = vmatpush1.msra.mxu0 0.0
        %219 = vmatprep.subr.mxu0 0.0
        %220 = vmatpush1.msra.mxu0 0.0
        %221 = vmatprep.subr.mxu0 0.0
        %222 = vmatpush1.msra.mxu0 0.0
        %223 = vmatprep.subr.mxu0 0.0
        %224 = vmatpush1.msra.mxu0 0.0
        %225 = vmatprep.subr.mxu0 0.0
        %226 = vmatpush1.msra.mxu0 0.0
        %227 = vmatprep.subr.mxu0 0.0
        %228 = vmatpush1.msra.mxu0 0.0
        %229 = vmatprep.subr.mxu0 0.0
        %230 = vmatpush1.msra.mxu0 0.0
        %231 = vmatprep.subr.mxu0 0.0
        %232 = vmatpush1.msra.mxu0 0.0
        %233 = vmatprep.subr.mxu0 0.0
        %234 = vmatpush1.msra.mxu0 0.0
        %235 = vmatprep.subr.mxu0 0.0
        %236 = vmatpush1.msra.mxu0 0.0
        %237 = vmatprep.subr.mxu0 0.0
        %238 = vmatpush1.msra.mxu0 0.0
        %239 = vmatprep.subr.mxu0 0.0
        %240 = vmatpush1.msra.mxu0 0.0
        %241 = vmatprep.subr.mxu0 0.0
        %242 = vmatpush1.msra.mxu0 0.0
        %243 = vmatprep.subr.mxu0 0.0
        %244 = vmatpush1.msra.mxu0 0.0
        %245 = vmatprep.subr.mxu0 0.0
        %246 = vmatpush1.msra.mxu0 0.0
        %247 = vmatprep.subr.mxu0 0.0
        %248 = vmatpush1.msra.mxu0 0.0
        %249 = vmatprep.subr.mxu0 0.0
        %250 = vmatpush1.msra.mxu0 0.0
        %251 = vmatprep.subr.mxu0 0.0
        %252 = vmatpush1.msra.mxu0 0.0
        %253 = vmatprep.subr.mxu0 0.0
        %254 = vmatpush1.msra.mxu0 0.0
        %255 = vmatprep.subr.mxu0 0.0
        %256 = vmatpush1.msra.mxu0 0.0
        %257 = vmatprep.subr.mxu0 0.0
        %258 = vmatpush1.msra.mxu0 0.0
        %259 = vmatprep.subr.mxu0 0.0
        %260 = vmatpush1.msra.mxu0 0.0
        %261 = vmatprep.subr.mxu0 0.0
        %262 = vmatpush1.msra.mxu0 0.0
        %263 = vmatprep.subr.mxu0 0.0
        %264 = vmatpush1.msra.mxu0 0.0
        %265 = vmatprep.subr.mxu0 0.0
        %266 = vmatpush1.msra.mxu0 0.0
        %267 = vmatprep.subr.mxu0 0.0
        %268 = vmatpush1.msra.mxu0 0.0
        %269 = vmatprep.subr.mxu0 0.0
        %270 = vmatpush1.msra.mxu0 0.0
        %271 = vmatprep.mubr.f32.mxu0 0.0
        %272 = vmatmul.mubr.f32.gmra.mrb[0].mxu0 %v202
        %v273 = vpop.f32.mrb[0].mxu0
        %v274 = vadd.f32 0.0, %v273
        %v275 = vpop.f32.mrb[0].mxu0
        %276 = vmatprep.mubr.f32.mxu0 0.0
        %277 = vmatmul.mubr.f32.gmra.mrb[0].mxu0 %v205
        %v278 = vpop.f32.mrb[0].mxu0
        %v279 = vadd.f32 0.0, %v278
        %v280 = vpop.f32.mrb[0].mxu0
        %281 = vdwg.mxu0
        %v283 = vsel %vm200, %v192, 0
        %v286 = vsel %vm200, %v193, 0
        %v289 = vsel %vm200, %v194, 0
        %v292 = vsel %vm200, %v195, 0
        %294 = vmatprep.subr.mxu0 0.0
        %295 = vmatpush1.msra.mxu0 %v274
        %296 = vmatprep.subr.mxu0 0.0
        %297 = vmatpush1.msra.mxu0 %v279
        %298 = vmatprep.subr.mxu0 0.0
        %299 = vmatpush1.msra.mxu0 0.0
        %300 = vmatprep.subr.mxu0 0.0
        %301 = vmatpush1.msra.mxu0 0.0
        %302 = vmatprep.subr.mxu0 0.0
        %303 = vmatpush1.msra.mxu0 0.0
        %304 = vmatprep.subr.mxu0 0.0
        %305 = vmatpush1.msra.mxu0 0.0
        %306 = vmatprep.subr.mxu0 0.0
        %307 = vmatpush1.msra.mxu0 0.0
        %308 = vmatprep.subr.mxu0 0.0
        %309 = vmatpush1.msra.mxu0 0.0
        %310 = vmatprep.subr.mxu0 0.0
        %311 = vmatpush1.msra.mxu0 0.0
        %312 = vmatprep.subr.mxu0 0.0
        %313 = vmatpush1.msra.mxu0 0.0
        %314 = vmatprep.subr.mxu0 0.0
        %315 = vmatpush1.msra.mxu0 0.0
        %316 = vmatprep.subr.mxu0 0.0
        %317 = vmatpush1.msra.mxu0 0.0
        %318 = vmatprep.subr.mxu0 0.0
        %319 = vmatpush1.msra.mxu0 0.0
        %320 = vmatprep.subr.mxu0 0.0
        %321 = vmatpush1.msra.mxu0 0.0
        %322 = vmatprep.subr.mxu0 0.0
        %323 = vmatpush1.msra.mxu0 0.0
        %324 = vmatprep.subr.mxu0 0.0
        %325 = vmatpush1.msra.mxu0 0.0
        %326 = vmatprep.subr.mxu0 0.0
        %327 = vmatpush1.msra.mxu0 0.0
        %328 = vmatprep.subr.mxu0 0.0
        %329 = vmatpush1.msra.mxu0 0.0
        %330 = vmatprep.subr.mxu0 0.0
        %331 = vmatpush1.msra.mxu0 0.0
        %332 = vmatprep.subr.mxu0 0.0
        %333 = vmatpush1.msra.mxu0 0.0
        %334 = vmatprep.subr.mxu0 0.0
        %335 = vmatpush1.msra.mxu0 0.0
        %336 = vmatprep.subr.mxu0 0.0
        %337 = vmatpush1.msra.mxu0 0.0
        %338 = vmatprep.subr.mxu0 0.0
        %339 = vmatpush1.msra.mxu0 0.0
        %340 = vmatprep.subr.mxu0 0.0
        %341 = vmatpush1.msra.mxu0 0.0
        %342 = vmatprep.subr.mxu0 0.0
        %343 = vmatpush1.msra.mxu0 0.0
        %344 = vmatprep.subr.mxu0 0.0
        %345 = vmatpush1.msra.mxu0 0.0
        %346 = vmatprep.subr.mxu0 0.0
        %347 = vmatpush1.msra.mxu0 0.0
        %348 = vmatprep.subr.mxu0 0.0
        %349 = vmatpush1.msra.mxu0 0.0
        %350 = vmatprep.subr.mxu0 0.0
        %351 = vmatpush1.msra.mxu0 0.0
        %352 = vmatprep.subr.mxu0 0.0
        %353 = vmatpush1.msra.mxu0 0.0
        %354 = vmatprep.subr.mxu0 0.0
        %355 = vmatpush1.msra.mxu0 0.0
        %356 = vmatprep.subr.mxu0 0.0
        %357 = vmatpush1.msra.mxu0 0.0
        %358 = vmatprep.mubr.f32.mxu0 0.0
        %359 = vmatmul.mubr.f32.gmra.mrb[0].mxu0 %v283
        %v360 = vpop.f32.mrb[0].mxu0
        %v361 = vadd.f32 0.0, %v360
        %v362 = vpop.f32.mrb[0].mxu0
        %363 = vmatprep.mubr.f32.mxu0 0.0
        %364 = vmatmul.mubr.f32.gmra.mrb[0].mxu0 %v286
        %v365 = vpop.f32.mrb[0].mxu0
        %v366 = vadd.f32 0.0, %v365
        %v367 = vpop.f32.mrb[0].mxu0
        %368 = vmatprep.mubr.f32.mxu0 0.0
        %369 = vmatmul.mubr.f32.gmra.mrb[0].mxu0 %v289
        %v370 = vpop.f32.mrb[0].mxu0
        %v371 = vadd.f32 0.0, %v370
        %v372 = vpop.f32.mrb[0].mxu0
        %373 = vmatprep.mubr.f32.mxu0 0.0
        %374 = vmatmul.mubr.f32.gmra.mrb[0].mxu0 %v292
        %v375 = vpop.f32.mrb[0].mxu0
        %v376 = vadd.f32 0.0, %v375
        %v377 = vpop.f32.mrb[0].mxu0
        %378 = vdwg.mxu0
        %vm379 = vcmask 261120
        %380 = vst.msk [vmem:[%s189] sm:$0xff] %vm379, %v361
        %381 = vst.msk [vmem:[%s189 + $0x8] sm:$0xff] %vm379, %v366
        %382 = vst.msk [vmem:[%s189 + $0x10] sm:$0xff] %vm379, %v371
        %383 = vst.msk [vmem:[%s189 + $0x18] sm:$0xff] %vm379, %v376
        %s384 = scalar_lea.vmem %s167, 16 [#allocation2]
        %v385 = vld [vmem:[%s384] sm:$0xff]
        %v386 = vld [vmem:[%s384 + $0x8] sm:$0xff]
        %v388 = vsel %vm200, %v385, 0
        %v391 = vsel %vm200, %v386, 0
        %393 = vmatprep.subr.mxu0 0.0
        %394 = vmatpush1.msra.mxu0 %v196
        %395 = vmatprep.subr.mxu0 0.0
        %396 = vmatpush1.msra.mxu0 %v197
        %397 = vmatprep.subr.mxu0 0.0
        %398 = vmatpush1.msra.mxu0 0.0
        %399 = vmatprep.subr.mxu0 0.0
        %400 = vmatpush1.msra.mxu0 0.0
        %401 = vmatprep.subr.mxu0 0.0
        %402 = vmatpush1.msra.mxu0 0.0
        %403 = vmatprep.subr.mxu0 0.0
        %404 = vmatpush1.msra.mxu0 0.0
        %405 = vmatprep.subr.mxu0 0.0
        %406 = vmatpush1.msra.mxu0 0.0
        %407 = vmatprep.subr.mxu0 0.0
        %408 = vmatpush1.msra.mxu0 0.0
        %409 = vmatprep.subr.mxu0 0.0
        %410 = vmatpush1.msra.mxu0 0.0
        %411 = vmatprep.subr.mxu0 0.0
        %412 = vmatpush1.msra.mxu0 0.0
        %413 = vmatprep.subr.mxu0 0.0
        %414 = vmatpush1.msra.mxu0 0.0
        %415 = vmatprep.subr.mxu0 0.0
        %416 = vmatpush1.msra.mxu0 0.0
        %417 = vmatprep.subr.mxu0 0.0
        %418 = vmatpush1.msra.mxu0 0.0
        %419 = vmatprep.subr.mxu0 0.0
        %420 = vmatpush1.msra.mxu0 0.0
        %421 = vmatprep.subr.mxu0 0.0
        %422 = vmatpush1.msra.mxu0 0.0
        %423 = vmatprep.subr.mxu0 0.0
        %424 = vmatpush1.msra.mxu0 0.0
        %425 = vmatprep.subr.mxu0 0.0
        %426 = vmatpush1.msra.mxu0 0.0
        %427 = vmatprep.subr.mxu0 0.0
        %428 = vmatpush1.msra.mxu0 0.0
        %429 = vmatprep.subr.mxu0 0.0
        %430 = vmatpush1.msra.mxu0 0.0
        %431 = vmatprep.subr.mxu0 0.0
        %432 = vmatpush1.msra.mxu0 0.0
        %433 = vmatprep.subr.mxu0 0.0
        %434 = vmatpush1.msra.mxu0 0.0
        %435 = vmatprep.subr.mxu0 0.0
        %436 = vmatpush1.msra.mxu0 0.0
        %437 = vmatprep.subr.mxu0 0.0
        %438 = vmatpush1.msra.mxu0 0.0
        %439 = vmatprep.subr.mxu0 0.0
        %440 = vmatpush1.msra.mxu0 0.0
        %441 = vmatprep.subr.mxu0 0.0
        %442 = vmatpush1.msra.mxu0 0.0
        %443 = vmatprep.subr.mxu0 0.0
        %444 = vmatpush1.msra.mxu0 0.0
        %445 = vmatprep.subr.mxu0 0.0
        %446 = vmatpush1.msra.mxu0 0.0
        %447 = vmatprep.subr.mxu0 0.0
        %448 = vmatpush1.msra.mxu0 0.0
        %449 = vmatprep.subr.mxu0 0.0
        %450 = vmatpush1.msra.mxu0 0.0
        %451 = vmatprep.subr.mxu0 0.0
        %452 = vmatpush1.msra.mxu0 0.0
        %453 = vmatprep.subr.mxu0 0.0
        %454 = vmatpush1.msra.mxu0 0.0
        %455 = vmatprep.subr.mxu0 0.0
        %456 = vmatpush1.msra.mxu0 0.0
        %457 = vmatprep.mubr.f32.mxu0 0.0
        %458 = vmatmul.mubr.f32.gmra.mrb[0].mxu0 %v388
        %v459 = vpop.f32.mrb[0].mxu0
        %v460 = vadd.f32 0.0, %v459
        %v461 = vpop.f32.mrb[0].mxu0
        %462 = vmatprep.mubr.f32.mxu0 0.0
        %463 = vmatmul.mubr.f32.gmra.mrb[0].mxu0 %v391
        %v464 = vpop.f32.mrb[0].mxu0
        %v465 = vadd.f32 0.0, %v464
        %v466 = vpop.f32.mrb[0].mxu0
        %467 = vdwg.mxu0
        %468 = vmatprep.subr.mxu0 0.0
        %469 = vmatpush1.msra.mxu0 %v460
        %470 = vmatprep.subr.mxu0 0.0
        %471 = vmatpush1.msra.mxu0 %v465
        %472 = vmatprep.subr.mxu0 0.0
        %473 = vmatpush1.msra.mxu0 0.0
        %474 = vmatprep.subr.mxu0 0.0
        %475 = vmatpush1.msra.mxu0 0.0
        %476 = vmatprep.subr.mxu0 0.0
        %477 = vmatpush1.msra.mxu0 0.0
        %478 = vmatprep.subr.mxu0 0.0
        %479 = vmatpush1.msra.mxu0 0.0
        %480 = vmatprep.subr.mxu0 0.0
        %481 = vmatpush1.msra.mxu0 0.0
        %482 = vmatprep.subr.mxu0 0.0
        %483 = vmatpush1.msra.mxu0 0.0
        %484 = vmatprep.subr.mxu0 0.0
        %485 = vmatpush1.msra.mxu0 0.0
        %486 = vmatprep.subr.mxu0 0.0
        %487 = vmatpush1.msra.mxu0 0.0
        %488 = vmatprep.subr.mxu0 0.0
        %489 = vmatpush1.msra.mxu0 0.0
        %490 = vmatprep.subr.mxu0 0.0
        %491 = vmatpush1.msra.mxu0 0.0
        %492 = vmatprep.subr.mxu0 0.0
        %493 = vmatpush1.msra.mxu0 0.0
        %494 = vmatprep.subr.mxu0 0.0
        %495 = vmatpush1.msra.mxu0 0.0
        %496 = vmatprep.subr.mxu0 0.0
        %497 = vmatpush1.msra.mxu0 0.0
        %498 = vmatprep.subr.mxu0 0.0
        %499 = vmatpush1.msra.mxu0 0.0
        %500 = vmatprep.subr.mxu0 0.0
        %501 = vmatpush1.msra.mxu0 0.0
        %502 = vmatprep.subr.mxu0 0.0
        %503 = vmatpush1.msra.mxu0 0.0
        %504 = vmatprep.subr.mxu0 0.0
        %505 = vmatpush1.msra.mxu0 0.0
        %506 = vmatprep.subr.mxu0 0.0
        %507 = vmatpush1.msra.mxu0 0.0
        %508 = vmatprep.subr.mxu0 0.0
        %509 = vmatpush1.msra.mxu0 0.0
        %510 = vmatprep.subr.mxu0 0.0
        %511 = vmatpush1.msra.mxu0 0.0
        %512 = vmatprep.subr.mxu0 0.0
        %513 = vmatpush1.msra.mxu0 0.0
        %514 = vmatprep.subr.mxu0 0.0
        %515 = vmatpush1.msra.mxu0 0.0
        %516 = vmatprep.subr.mxu0 0.0
        %517 = vmatpush1.msra.mxu0 0.0
        %518 = vmatprep.subr.mxu0 0.0
        %519 = vmatpush1.msra.mxu0 0.0
        %520 = vmatprep.subr.mxu0 0.0
        %521 = vmatpush1.msra.mxu0 0.0
        %522 = vmatprep.subr.mxu0 0.0
        %523 = vmatpush1.msra.mxu0 0.0
        %524 = vmatprep.subr.mxu0 0.0
        %525 = vmatpush1.msra.mxu0 0.0
        %526 = vmatprep.subr.mxu0 0.0
        %527 = vmatpush1.msra.mxu0 0.0
        %528 = vmatprep.subr.mxu0 0.0
        %529 = vmatpush1.msra.mxu0 0.0
        %530 = vmatprep.subr.mxu0 0.0
        %531 = vmatpush1.msra.mxu0 0.0
        %532 = vmatprep.mubr.f32.mxu0 0.0
        %533 = vmatmul.mubr.f32.gmra.mrb[0].mxu0 %v283
        %v534 = vpop.f32.mrb[0].mxu0
        %v535 = vadd.f32 0.0, %v534
        %v536 = vpop.f32.mrb[0].mxu0
        %537 = vmatprep.mubr.f32.mxu0 0.0
        %538 = vmatmul.mubr.f32.gmra.mrb[0].mxu0 %v286
        %v539 = vpop.f32.mrb[0].mxu0
        %v540 = vadd.f32 0.0, %v539
        %v541 = vpop.f32.mrb[0].mxu0
        %542 = vmatprep.mubr.f32.mxu0 0.0
        %543 = vmatmul.mubr.f32.gmra.mrb[0].mxu0 %v289
        %v544 = vpop.f32.mrb[0].mxu0
        %v545 = vadd.f32 0.0, %v544
        %v546 = vpop.f32.mrb[0].mxu0
        %547 = vmatprep.mubr.f32.mxu0 0.0
        %548 = vmatmul.mubr.f32.gmra.mrb[0].mxu0 %v292
        %v549 = vpop.f32.mrb[0].mxu0
        %v550 = vadd.f32 0.0, %v549
        %v551 = vpop.f32.mrb[0].mxu0
        %552 = vdwg.mxu0
        %s553 = scalar_lea.vmem %s189, 32 [#allocation5]
        %554 = vst.msk [vmem:[%s553] sm:$0xff] %vm379, %v535
        %555 = vst.msk [vmem:[%s553 + $0x8] sm:$0xff] %vm379, %v540
        %556 = vst.msk [vmem:[%s553 + $0x10] sm:$0xff] %vm379, %v545
        %557 = vst.msk [vmem:[%s553 + $0x18] sm:$0xff] %vm379, %v550
        %s558 = scalar_lea.vmem %s167, 32 [#allocation2]
        %v559 = vld [vmem:[%s558] sm:$0xff]
        %v560 = vld [vmem:[%s558 + $0x8] sm:$0xff]
        %v562 = vsel %vm200, %v559, 0
        %v565 = vsel %vm200, %v560, 0
        %567 = vmatprep.subr.mxu0 0.0
        %568 = vmatpush1.msra.mxu0 %v196
        %569 = vmatprep.subr.mxu0 0.0
        %570 = vmatpush1.msra.mxu0 %v197
        %571 = vmatprep.subr.mxu0 0.0
        %572 = vmatpush1.msra.mxu0 0.0
        %573 = vmatprep.subr.mxu0 0.0
        %574 = vmatpush1.msra.mxu0 0.0
        %575 = vmatprep.subr.mxu0 0.0
        %576 = vmatpush1.msra.mxu0 0.0
        %577 = vmatprep.subr.mxu0 0.0
        %578 = vmatpush1.msra.mxu0 0.0
        %579 = vmatprep.subr.mxu0 0.0
        %580 = vmatpush1.msra.mxu0 0.0
        %581 = vmatprep.subr.mxu0 0.0
        %582 = vmatpush1.msra.mxu0 0.0
        %583 = vmatprep.subr.mxu0 0.0
        %584 = vmatpush1.msra.mxu0 0.0
        %585 = vmatprep.subr.mxu0 0.0
        %586 = vmatpush1.msra.mxu0 0.0
        %587 = vmatprep.subr.mxu0 0.0
        %588 = vmatpush1.msra.mxu0 0.0
        %589 = vmatprep.subr.mxu0 0.0
        %590 = vmatpush1.msra.mxu0 0.0
        %591 = vmatprep.subr.mxu0 0.0
        %592 = vmatpush1.msra.mxu0 0.0
        %593 = vmatprep.subr.mxu0 0.0
        %594 = vmatpush1.msra.mxu0 0.0
        %595 = vmatprep.subr.mxu0 0.0
        %596 = vmatpush1.msra.mxu0 0.0
        %597 = vmatprep.subr.mxu0 0.0
        %598 = vmatpush1.msra.mxu0 0.0
        %599 = vmatprep.subr.mxu0 0.0
        %600 = vmatpush1.msra.mxu0 0.0
        %601 = vmatprep.subr.mxu0 0.0
        %602 = vmatpush1.msra.mxu0 0.0
        %603 = vmatprep.subr.mxu0 0.0
        %604 = vmatpush1.msra.mxu0 0.0
        %605 = vmatprep.subr.mxu0 0.0
        %606 = vmatpush1.msra.mxu0 0.0
        %607 = vmatprep.subr.mxu0 0.0
        %608 = vmatpush1.msra.mxu0 0.0
        %609 = vmatprep.subr.mxu0 0.0
        %610 = vmatpush1.msra.mxu0 0.0
        %611 = vmatprep.subr.mxu0 0.0
        %612 = vmatpush1.msra.mxu0 0.0
        %613 = vmatprep.subr.mxu0 0.0
        %614 = vmatpush1.msra.mxu0 0.0
        %615 = vmatprep.subr.mxu0 0.0
        %616 = vmatpush1.msra.mxu0 0.0
        %617 = vmatprep.subr.mxu0 0.0
        %618 = vmatpush1.msra.mxu0 0.0
        %619 = vmatprep.subr.mxu0 0.0
        %620 = vmatpush1.msra.mxu0 0.0
        %621 = vmatprep.subr.mxu0 0.0
        %622 = vmatpush1.msra.mxu0 0.0
        %623 = vmatprep.subr.mxu0 0.0
        %624 = vmatpush1.msra.mxu0 0.0
        %625 = vmatprep.subr.mxu0 0.0
        %626 = vmatpush1.msra.mxu0 0.0
        %627 = vmatprep.subr.mxu0 0.0
        %628 = vmatpush1.msra.mxu0 0.0
        %629 = vmatprep.subr.mxu0 0.0
        %630 = vmatpush1.msra.mxu0 0.0
        %631 = vmatprep.mubr.f32.mxu0 0.0
        %632 = vmatmul.mubr.f32.gmra.mrb[0].mxu0 %v562
        %v633 = vpop.f32.mrb[0].mxu0
        %v634 = vadd.f32 0.0, %v633
        %v635 = vpop.f32.mrb[0].mxu0
        %636 = vmatprep.mubr.f32.mxu0 0.0
        %637 = vmatmul.mubr.f32.gmra.mrb[0].mxu0 %v565
        %v638 = vpop.f32.mrb[0].mxu0
        %v639 = vadd.f32 0.0, %v638
        %v640 = vpop.f32.mrb[0].mxu0
        %641 = vdwg.mxu0
        %642 = vmatprep.subr.mxu0 0.0
        %643 = vmatpush1.msra.mxu0 %v634
        %644 = vmatprep.subr.mxu0 0.0
        %645 = vmatpush1.msra.mxu0 %v639
        %646 = vmatprep.subr.mxu0 0.0
        %647 = vmatpush1.msra.mxu0 0.0
        %648 = vmatprep.subr.mxu0 0.0
        %649 = vmatpush1.msra.mxu0 0.0
        %650 = vmatprep.subr.mxu0 0.0
        %651 = vmatpush1.msra.mxu0 0.0
        %652 = vmatprep.subr.mxu0 0.0
        %653 = vmatpush1.msra.mxu0 0.0
        %654 = vmatprep.subr.mxu0 0.0
        %655 = vmatpush1.msra.mxu0 0.0
        %656 = vmatprep.subr.mxu0 0.0
        %657 = vmatpush1.msra.mxu0 0.0
        %658 = vmatprep.subr.mxu0 0.0
        %659 = vmatpush1.msra.mxu0 0.0
        %660 = vmatprep.subr.mxu0 0.0
        %661 = vmatpush1.msra.mxu0 0.0
        %662 = vmatprep.subr.mxu0 0.0
        %663 = vmatpush1.msra.mxu0 0.0
        %664 = vmatprep.subr.mxu0 0.0
        %665 = vmatpush1.msra.mxu0 0.0
        %666 = vmatprep.subr.mxu0 0.0
        %667 = vmatpush1.msra.mxu0 0.0
        %668 = vmatprep.subr.mxu0 0.0
        %669 = vmatpush1.msra.mxu0 0.0
        %670 = vmatprep.subr.mxu0 0.0
        %671 = vmatpush1.msra.mxu0 0.0
        %672 = vmatprep.subr.mxu0 0.0
        %673 = vmatpush1.msra.mxu0 0.0
        %674 = vmatprep.subr.mxu0 0.0
        %675 = vmatpush1.msra.mxu0 0.0
        %676 = vmatprep.subr.mxu0 0.0
        %677 = vmatpush1.msra.mxu0 0.0
        %678 = vmatprep.subr.mxu0 0.0
        %679 = vmatpush1.msra.mxu0 0.0
        %680 = vmatprep.subr.mxu0 0.0
        %681 = vmatpush1.msra.mxu0 0.0
        %682 = vmatprep.subr.mxu0 0.0
        %683 = vmatpush1.msra.mxu0 0.0
        %684 = vmatprep.subr.mxu0 0.0
        %685 = vmatpush1.msra.mxu0 0.0
        %686 = vmatprep.subr.mxu0 0.0
        %687 = vmatpush1.msra.mxu0 0.0
        %688 = vmatprep.subr.mxu0 0.0
        %689 = vmatpush1.msra.mxu0 0.0
        %690 = vmatprep.subr.mxu0 0.0
        %691 = vmatpush1.msra.mxu0 0.0
        %692 = vmatprep.subr.mxu0 0.0
        %693 = vmatpush1.msra.mxu0 0.0
        %694 = vmatprep.subr.mxu0 0.0
        %695 = vmatpush1.msra.mxu0 0.0
        %696 = vmatprep.subr.mxu0 0.0
        %697 = vmatpush1.msra.mxu0 0.0
        %698 = vmatprep.subr.mxu0 0.0
        %699 = vmatpush1.msra.mxu0 0.0
        %700 = vmatprep.subr.mxu0 0.0
        %701 = vmatpush1.msra.mxu0 0.0
        %702 = vmatprep.subr.mxu0 0.0
        %703 = vmatpush1.msra.mxu0 0.0
        %704 = vmatprep.subr.mxu0 0.0
        %705 = vmatpush1.msra.mxu0 0.0
        %706 = vmatprep.mubr.f32.mxu0 0.0
        %707 = vmatmul.mubr.f32.gmra.mrb[0].mxu0 %v283
        %v708 = vpop.f32.mrb[0].mxu0
        %v709 = vadd.f32 0.0, %v708
        %v710 = vpop.f32.mrb[0].mxu0
        %711 = vmatprep.mubr.f32.mxu0 0.0
        %712 = vmatmul.mubr.f32.gmra.mrb[0].mxu0 %v286
        %v713 = vpop.f32.mrb[0].mxu0
        %v714 = vadd.f32 0.0, %v713
        %v715 = vpop.f32.mrb[0].mxu0
        %716 = vmatprep.mubr.f32.mxu0 0.0
        %717 = vmatmul.mubr.f32.gmra.mrb[0].mxu0 %v289
        %v718 = vpop.f32.mrb[0].mxu0
        %v719 = vadd.f32 0.0, %v718
        %v720 = vpop.f32.mrb[0].mxu0
        %721 = vmatprep.mubr.f32.mxu0 0.0
        %722 = vmatmul.mubr.f32.gmra.mrb[0].mxu0 %v292
        %v723 = vpop.f32.mrb[0].mxu0
        %v724 = vadd.f32 0.0, %v723
        %v725 = vpop.f32.mrb[0].mxu0
        %726 = vdwg.mxu0
        %s727 = scalar_lea.vmem %s189, 64 [#allocation5]
        %728 = vst.msk [vmem:[%s727] sm:$0xff] %vm379, %v709
        %729 = vst.msk [vmem:[%s727 + $0x8] sm:$0xff] %vm379, %v714
        %730 = vst.msk [vmem:[%s727 + $0x10] sm:$0xff] %vm379, %v719
        %731 = vst.msk [vmem:[%s727 + $0x18] sm:$0xff] %vm379, %v724
        %s732 = scalar_lea.vmem %s167, 48 [#allocation2]
        %v733 = vld [vmem:[%s732] sm:$0xff]
        %v734 = vld [vmem:[%s732 + $0x8] sm:$0xff]
        %v736 = vsel %vm200, %v733, 0
        %v739 = vsel %vm200, %v734, 0
        %741 = vmatprep.subr.mxu0 0.0
        %742 = vmatpush1.msra.mxu0 %v196
        %743 = vmatprep.subr.mxu0 0.0
        %744 = vmatpush1.msra.mxu0 %v197
        %745 = vmatprep.subr.mxu0 0.0
        %746 = vmatpush1.msra.mxu0 0.0
        %747 = vmatprep.subr.mxu0 0.0
        %748 = vmatpush1.msra.mxu0 0.0
        %749 = vmatprep.subr.mxu0 0.0
        %750 = vmatpush1.msra.mxu0 0.0
        %751 = vmatprep.subr.mxu0 0.0
        %752 = vmatpush1.msra.mxu0 0.0
        %753 = vmatprep.subr.mxu0 0.0
        %754 = vmatpush1.msra.mxu0 0.0
        %755 = vmatprep.subr.mxu0 0.0
        %756 = vmatpush1.msra.mxu0 0.0
        %757 = vmatprep.subr.mxu0 0.0
        %758 = vmatpush1.msra.mxu0 0.0
        %759 = vmatprep.subr.mxu0 0.0
        %760 = vmatpush1.msra.mxu0 0.0
        %761 = vmatprep.subr.mxu0 0.0
        %762 = vmatpush1.msra.mxu0 0.0
        %763 = vmatprep.subr.mxu0 0.0
        %764 = vmatpush1.msra.mxu0 0.0
        %765 = vmatprep.subr.mxu0 0.0
        %766 = vmatpush1.msra.mxu0 0.0
        %767 = vmatprep.subr.mxu0 0.0
        %768 = vmatpush1.msra.mxu0 0.0
        %769 = vmatprep.subr.mxu0 0.0
        %770 = vmatpush1.msra.mxu0 0.0
        %771 = vmatprep.subr.mxu0 0.0
        %772 = vmatpush1.msra.mxu0 0.0
        %773 = vmatprep.subr.mxu0 0.0
        %774 = vmatpush1.msra.mxu0 0.0
        %775 = vmatprep.subr.mxu0 0.0
        %776 = vmatpush1.msra.mxu0 0.0
        %777 = vmatprep.subr.mxu0 0.0
        %778 = vmatpush1.msra.mxu0 0.0
        %779 = vmatprep.subr.mxu0 0.0
        %780 = vmatpush1.msra.mxu0 0.0
        %781 = vmatprep.subr.mxu0 0.0
        %782 = vmatpush1.msra.mxu0 0.0
        %783 = vmatprep.subr.mxu0 0.0
        %784 = vmatpush1.msra.mxu0 0.0
        %785 = vmatprep.subr.mxu0 0.0
        %786 = vmatpush1.msra.mxu0 0.0
        %787 = vmatprep.subr.mxu0 0.0
        %788 = vmatpush1.msra.mxu0 0.0
        %789 = vmatprep.subr.mxu0 0.0
        %790 = vmatpush1.msra.mxu0 0.0
        %791 = vmatprep.subr.mxu0 0.0
        %792 = vmatpush1.msra.mxu0 0.0
        %793 = vmatprep.subr.mxu0 0.0
        %794 = vmatpush1.msra.mxu0 0.0
        %795 = vmatprep.subr.mxu0 0.0
        %796 = vmatpush1.msra.mxu0 0.0
        %797 = vmatprep.subr.mxu0 0.0
        %798 = vmatpush1.msra.mxu0 0.0
        %799 = vmatprep.subr.mxu0 0.0
        %800 = vmatpush1.msra.mxu0 0.0
        %801 = vmatprep.subr.mxu0 0.0
        %802 = vmatpush1.msra.mxu0 0.0
        %803 = vmatprep.subr.mxu0 0.0
        %804 = vmatpush1.msra.mxu0 0.0
        %805 = vmatprep.mubr.f32.mxu0 0.0
        %806 = vmatmul.mubr.f32.gmra.mrb[0].mxu0 %v736
        %v807 = vpop.f32.mrb[0].mxu0
        %v808 = vadd.f32 0.0, %v807
        %v809 = vpop.f32.mrb[0].mxu0
        %810 = vmatprep.mubr.f32.mxu0 0.0
        %811 = vmatmul.mubr.f32.gmra.mrb[0].mxu0 %v739
        %v812 = vpop.f32.mrb[0].mxu0
        %v813 = vadd.f32 0.0, %v812
        %v814 = vpop.f32.mrb[0].mxu0
        %815 = vdwg.mxu0
        %816 = vmatprep.subr.mxu0 0.0
        %817 = vmatpush1.msra.mxu0 %v808
        %818 = vmatprep.subr.mxu0 0.0
        %819 = vmatpush1.msra.mxu0 %v813
        %820 = vmatprep.subr.mxu0 0.0
        %821 = vmatpush1.msra.mxu0 0.0
        %822 = vmatprep.subr.mxu0 0.0
        %823 = vmatpush1.msra.mxu0 0.0
        %824 = vmatprep.subr.mxu0 0.0
        %825 = vmatpush1.msra.mxu0 0.0
        %826 = vmatprep.subr.mxu0 0.0
        %827 = vmatpush1.msra.mxu0 0.0
        %828 = vmatprep.subr.mxu0 0.0
        %829 = vmatpush1.msra.mxu0 0.0
        %830 = vmatprep.subr.mxu0 0.0
        %831 = vmatpush1.msra.mxu0 0.0
        %832 = vmatprep.subr.mxu0 0.0
        %833 = vmatpush1.msra.mxu0 0.0
        %834 = vmatprep.subr.mxu0 0.0
        %835 = vmatpush1.msra.mxu0 0.0
        %836 = vmatprep.subr.mxu0 0.0
        %837 = vmatpush1.msra.mxu0 0.0
        %838 = vmatprep.subr.mxu0 0.0
        %839 = vmatpush1.msra.mxu0 0.0
        %840 = vmatprep.subr.mxu0 0.0
        %841 = vmatpush1.msra.mxu0 0.0
        %842 = vmatprep.subr.mxu0 0.0
        %843 = vmatpush1.msra.mxu0 0.0
        %844 = vmatprep.subr.mxu0 0.0
        %845 = vmatpush1.msra.mxu0 0.0
        %846 = vmatprep.subr.mxu0 0.0
        %847 = vmatpush1.msra.mxu0 0.0
        %848 = vmatprep.subr.mxu0 0.0
        %849 = vmatpush1.msra.mxu0 0.0
        %850 = vmatprep.subr.mxu0 0.0
        %851 = vmatpush1.msra.mxu0 0.0
        %852 = vmatprep.subr.mxu0 0.0
        %853 = vmatpush1.msra.mxu0 0.0
        %854 = vmatprep.subr.mxu0 0.0
        %855 = vmatpush1.msra.mxu0 0.0
        %856 = vmatprep.subr.mxu0 0.0
        %857 = vmatpush1.msra.mxu0 0.0
        %858 = vmatprep.subr.mxu0 0.0
        %859 = vmatpush1.msra.mxu0 0.0
        %860 = vmatprep.subr.mxu0 0.0
        %861 = vmatpush1.msra.mxu0 0.0
        %862 = vmatprep.subr.mxu0 0.0
        %863 = vmatpush1.msra.mxu0 0.0
        %864 = vmatprep.subr.mxu0 0.0
        %865 = vmatpush1.msra.mxu0 0.0
        %866 = vmatprep.subr.mxu0 0.0
        %867 = vmatpush1.msra.mxu0 0.0
        %868 = vmatprep.subr.mxu0 0.0
        %869 = vmatpush1.msra.mxu0 0.0
        %870 = vmatprep.subr.mxu0 0.0
        %871 = vmatpush1.msra.mxu0 0.0
        %872 = vmatprep.subr.mxu0 0.0
        %873 = vmatpush1.msra.mxu0 0.0
        %874 = vmatprep.subr.mxu0 0.0
        %875 = vmatpush1.msra.mxu0 0.0
        %876 = vmatprep.subr.mxu0 0.0
        %877 = vmatpush1.msra.mxu0 0.0
        %878 = vmatprep.subr.mxu0 0.0
        %879 = vmatpush1.msra.mxu0 0.0
        %880 = vmatprep.mubr.f32.mxu0 0.0
        %881 = vmatmul.mubr.f32.gmra.mrb[0].mxu0 %v283
        %v882 = vpop.f32.mrb[0].mxu0
        %v883 = vadd.f32 0.0, %v882
        %v884 = vpop.f32.mrb[0].mxu0
        %885 = vmatprep.mubr.f32.mxu0 0.0
        %886 = vmatmul.mubr.f32.gmra.mrb[0].mxu0 %v286
        %v887 = vpop.f32.mrb[0].mxu0
        %v888 = vadd.f32 0.0, %v887
        %v889 = vpop.f32.mrb[0].mxu0
        %890 = vmatprep.mubr.f32.mxu0 0.0
        %891 = vmatmul.mubr.f32.gmra.mrb[0].mxu0 %v289
        %v892 = vpop.f32.mrb[0].mxu0
        %v893 = vadd.f32 0.0, %v892
        %v894 = vpop.f32.mrb[0].mxu0
        %895 = vmatprep.mubr.f32.mxu0 0.0
        %896 = vmatmul.mubr.f32.gmra.mrb[0].mxu0 %v292
        %v897 = vpop.f32.mrb[0].mxu0
        %v898 = vadd.f32 0.0, %v897
        %v899 = vpop.f32.mrb[0].mxu0
        %900 = vdwg.mxu0
        %s901 = scalar_lea.vmem %s189, 96 [#allocation5]
        %902 = vst.msk [vmem:[%s901] sm:$0xff] %vm379, %v883
        %903 = vst.msk [vmem:[%s901 + $0x8] sm:$0xff] %vm379, %v888
        %904 = vst.msk [vmem:[%s901 + $0x10] sm:$0xff] %vm379, %v893
        %905 = vst.msk [vmem:[%s901 + $0x18] sm:$0xff] %vm379, %v898
        %s906 = sand.u32 %s96, 1
        %s907 = scalar_lea.sflag [#allocation4], %s906
        %s908 = sand.u32 %s96, 1
        %s909 = smul.addr %s908, 128
        %s910 = scalar_lea.vmem [#allocation5], %s909
        // Predicated region
        $region37: #{tpu_custom_call.1} parent=31 // pred_check
          %p911 = pneg %p106
        $region38: #{tpu_custom_call.1} parent=31 // pred_check_branch
          %913 = sbr.rel (%p911) target = $region40
        $region39: #{tpu_custom_call.1} parent=31 // pred_region
          %s914 = smul.u32 4, %s20
          %s916 = ssub.s32 2048, 2048
          %917 = vsyncadd %s907, %s916
          %s918 = smul.addr %s914, 4
          %s919 = smul.addr %s918, 128
          %s920 = scalar_lea.hbm %s3, %s919
          %s921 = sshll.u32 %s910, 4
          %s922 = int_to_ptr.vmem [resolvable:$true] %s921
          %927 = dma.vmem_to_hbm [thread:$0]  %s922, 2048, %s920, %s907, 128, 128, 8
        $region40: #{tpu_custom_call.1} parent=31 // pred_fallthru
          _
      $region32: #{tpu_custom_call.1} parent=5 // pred_fallthru
        _
      %p928 = scmp.le.s32.totalorder 2, %s15
      // Predicated region
      $region41: #{tpu_custom_call.1} parent=5 // pred_check
        %p929 = pneg %p928
      $region42: #{tpu_custom_call.1} parent=5 // pred_check_branch
        %931 = sbr.rel (%p929) target = $region44
      $region43: #{tpu_custom_call.1} parent=5 // pred_region
        %s932 = ssub.s32 %s15, 2
        // Predicated region
        $region45: #{tpu_custom_call.1} parent=43 // pred_check
          %p933 = pneg %p112
        $region46: #{tpu_custom_call.1} parent=43 // pred_check_branch
          %935 = sbr.rel (%p933) target = $region48
        $region47: #{tpu_custom_call.1} parent=43 // pred_region
          %s936 = sand.u32 %s97, 1
          %s937 = scalar_lea.sflag [#allocation4], %s936
          %s938 = sand.u32 %s97, 1
          %s939 = smul.addr %s938, 128
          %s940 = scalar_lea.vmem [#allocation5], %s939
          %941 = dma.done %s937, 2048
        $region48: #{tpu_custom_call.1} parent=43 // pred_fallthru
          _
      $region44: #{tpu_custom_call.1} parent=5 // pred_fallthru
        _
    $region6: #{tpu_custom_call.1} parent=1 // loop_footer
      %s19 = sadd.s32 1, %s15
    $region7: #{tpu_custom_call.1} parent=1 // loop_footer_branch
      %14 = sbr.rel target = $region3
    $region8: #{tpu_custom_call.1} parent=1 // loop_exit
      _
    %942 = vsyncpa [#allocation3], 1
    %s943 = scalar_lea.sflag [#allocation3], 1
    %944 = vsyncpa %s943, 1
    %945 = vsyncpa [#allocation4], 1
    %s946 = scalar_lea.sflag [#allocation4], 1
    %947 = vsyncpa %s946, 1

</llo_original>
